<compile_context>
chip_gen: v7x
topology: tpu7x:2x2x1
jax: 0.10.0
libtpu: 0.0.40
codegen_flags: <defaults>
</compile_context>

<pallas_src>
import functools

import jax
import jax.numpy as jnp
from jax.experimental import pallas as pl
from jax.experimental.pallas import tpu as pltpu

_LANE = 128
_SUBLANE = 8


def _round_up(x, m):
    return ((x + m - 1) // m) * m


# ----------------------------- kernels -------------------------------------


def _mlp_kernel(e_ref, z_ref, w1e_ref, w1n_ref, b1_ref, w2_ref, b2_ref, feat_ref):
    """[embd|noise] -> Linear -> LeakyReLU(0.2) -> (Dropout=id) -> Linear."""
    h = (jnp.dot(e_ref[...], w1e_ref[...], preferred_element_type=jnp.float32)
         + jnp.dot(z_ref[...], w1n_ref[...], preferred_element_type=jnp.float32)
         + b1_ref[...].astype(jnp.float32))
    h = jnp.where(h > 0, h, 0.2 * h)                     # LeakyReLU(0.2) in f32
    feat = (jnp.dot(h.astype(w2_ref.dtype), w2_ref[...],
                    preferred_element_type=jnp.float32)
            + b2_ref[...].astype(jnp.float32))
    feat_ref[...] = feat.astype(feat_ref.dtype)


def _mlp_semrec_kernel(e_ref, z_ref, w1e_ref, w1n_ref, b1_ref, w2_ref, b2_ref,
                       w3_ref, b3_ref, feat_ref, sem_ref):
    """Same as _mlp_kernel plus the fused semantic-reconstruction Linear."""
    h = (jnp.dot(e_ref[...], w1e_ref[...], preferred_element_type=jnp.float32)
         + jnp.dot(z_ref[...], w1n_ref[...], preferred_element_type=jnp.float32)
         + b1_ref[...].astype(jnp.float32))
    h = jnp.where(h > 0, h, 0.2 * h)
    feat = (jnp.dot(h.astype(w2_ref.dtype), w2_ref[...],
                    preferred_element_type=jnp.float32)
            + b2_ref[...].astype(jnp.float32))
    sem = (jnp.dot(feat.astype(w3_ref.dtype), w3_ref[...],
                   preferred_element_type=jnp.float32)
           + b3_ref[...].astype(jnp.float32))
    feat_ref[...] = feat.astype(feat_ref.dtype)
    sem_ref[...] = sem.astype(sem_ref.dtype)


def _lin_kernel(e_ref, z_ref, we_ref, wn_ref, b_ref, feat_ref):
    """hidden_size == 0/None branch: a single Linear layer."""
    feat = (jnp.dot(e_ref[...], we_ref[...], preferred_element_type=jnp.float32)
            + jnp.dot(z_ref[...], wn_ref[...], preferred_element_type=jnp.float32)
            + b_ref[...].astype(jnp.float32))
    feat_ref[...] = feat.astype(feat_ref.dtype)


def _lin_semrec_kernel(e_ref, z_ref, we_ref, wn_ref, b_ref,
                       w3_ref, b3_ref, feat_ref, sem_ref):
    """Single Linear branch with the semantic-reconstruction Linear fused in."""
    feat = (jnp.dot(e_ref[...], we_ref[...], preferred_element_type=jnp.float32)
            + jnp.dot(z_ref[...], wn_ref[...], preferred_element_type=jnp.float32)
            + b_ref[...].astype(jnp.float32))
    sem = (jnp.dot(feat.astype(w3_ref.dtype), w3_ref[...],
                   preferred_element_type=jnp.float32)
           + b3_ref[...].astype(jnp.float32))
    feat_ref[...] = feat.astype(feat_ref.dtype)
    sem_ref[...] = sem.astype(sem_ref.dtype)


# --------------------------- parameter init ---------------------------------


def _xavier_uniform(key, fan_in, fan_out, dtype):
    # torch.nn.init.xavier_uniform_: U(-a, a), a = sqrt(6 / (fan_in + fan_out)).
    # Stored as (in, out) == transpose of PyTorch (out, in); semantics identical.
    a = (6.0 / (fan_in + fan_out)) ** 0.5
    w = jax.random.uniform(key, (fan_in, fan_out), jnp.float32, minval=-a, maxval=a)
    return w.astype(dtype)


def _pad2(w, rows, cols):
    return jnp.pad(w, ((0, rows - w.shape[0]), (0, cols - w.shape[1])))


def init_gmmn_params(key, noise_dim, embed_dim, hidden_size, feature_dim,
                     semantic_reconstruction=False, dtype=jnp.float32):
    """Weights are stored pre-split (embd/noise rows) and zero-padded to 128 lanes."""
    in_dim = noise_dim + embed_dim
    in_pad = _round_up(in_dim, _LANE)
    feat_pad = _round_up(feature_dim, _LANE)
    k1, k2, k3 = jax.random.split(key, 3)
    params = {}
    if hidden_size:
        hid_pad = _round_up(hidden_size, _LANE)
        w1 = _xavier_uniform(k1, in_dim, hidden_size, dtype)
        # cat((embd, noise), 1): first embed_dim rows multiply embd, rest multiply noise
        params["w1e"] = _pad2(w1[:embed_dim], embed_dim, hid_pad)
        params["w1n"] = _pad2(w1[embed_dim:], noise_dim, hid_pad)
        params["b1"] = _pad2(jnp.full((1, hidden_size), 0.01, dtype), 1, hid_pad)
        w2 = _xavier_uniform(k2, hidden_size, feature_dim, dtype)
        params["w2"] = _pad2(w2, hid_pad, feat_pad)
        params["b2"] = _pad2(jnp.full((1, feature_dim), 0.01, dtype), 1, feat_pad)
    else:
        w = _xavier_uniform(k1, in_dim, feature_dim, dtype)
        params["we"] = _pad2(w[:embed_dim], embed_dim, feat_pad)
        params["wn"] = _pad2(w[embed_dim:], noise_dim, feat_pad)
        params["b"] = _pad2(jnp.full((1, feature_dim), 0.01, dtype), 1, feat_pad)
    if semantic_reconstruction:
        # TODO(synk): PyTorch's default nn.Linear init (kaiming-uniform) for this
        # layer is not reproduced; deterministic xavier + zero bias used instead.
        w3 = _xavier_uniform(k3, feature_dim, in_dim, dtype)
        params["w3"] = _pad2(w3, feat_pad, in_pad)
        params["b3"] = jnp.zeros((1, in_pad), dtype)
    return params


# ------------------------------ wrapper --------------------------------------


def _compiler_params(tb, row_cols, weights, act_itemsize):
    # Rough VMEM budget: double-buffered activation tiles + (conservatively 2x) weights.
    act_bytes = 2 * 2 * tb * sum(row_cols) * act_itemsize
    wgt_bytes = 2 * sum(int(w.size) * w.dtype.itemsize for w in weights)
    limit = int(max(32 * 1024 * 1024, min(64 * 1024 * 1024, 2 * (act_bytes + wgt_bytes))))
    return pltpu.CompilerParams(dimension_semantics=("parallel",),
                                vmem_limit_bytes=limit)


@functools.partial(jax.jit, static_argnames=("hidden_size", "feature_dim",
                                             "semantic_reconstruction", "block_b"))
def gmmn_forward(params, embd, noise, *, hidden_size, feature_dim,
                 semantic_reconstruction=False, block_b=256):
    """embd: (B, embed_dim), noise: (B, noise_dim)
    -> features (B, feature_dim) [, semantic (B, noise_dim+embed_dim)]"""
    B, E = embd.shape
    _, Z = noise.shape
    sem_dim = E + Z
    out_dtype = embd.dtype
    itemsize = embd.dtype.itemsize

    # Batch tiling: tile multiple of 8 sublanes, capped at block_b; pad tail rows.
    tb = min(block_b, _round_up(B, _SUBLANE))
    bp = _round_up(B, tb)
    if bp != B:
        embd = jnp.pad(embd, ((0, bp - B), (0, 0)))
        noise = jnp.pad(noise, ((0, bp - B), (0, 0)))
    grid = (bp // tb,)

    def row_spec(cols):                       # batch-streamed tiles
        return pl.BlockSpec((tb, cols), lambda i: (i, 0))

    def resident_spec(shape):                 # weights/biases: constant index_map
        return pl.BlockSpec(shape, lambda i: (0,) * len(shape))

    if hidden_size:
        w1e, w1n, b1 = params["w1e"], params["w1n"], params["b1"]
        w2, b2 = params["w2"], params["b2"]
        feat_pad = w2.shape[1]
        if semantic_reconstruction:
            w3, b3 = params["w3"], params["b3"]
            sem_pad = w3.shape[1]
            cp = _compiler_params(tb, (E, Z, feat_pad, sem_pad),
                                  (w1e, w1n, b1, w2, b2, w3, b3), itemsize)
            feats, sem = pl.pallas_call(
                _mlp_semrec_kernel,
                grid=grid,
                out_shape=(jax.ShapeDtypeStruct((bp, feat_pad), out_dtype),
                           jax.ShapeDtypeStruct((bp, sem_pad), out_dtype)),
                in_specs=[row_spec(E), row_spec(Z),
                          resident_spec(w1e.shape), resident_spec(w1n.shape),
                          resident_spec(b1.shape), resident_spec(w2.shape),
                          resident_spec(b2.shape), resident_spec(w3.shape),
                          resident_spec(b3.shape)],
                out_specs=(row_spec(feat_pad), row_spec(sem_pad)),
                compiler_params=cp,
            )(embd, noise, w1e, w1n, b1, w2, b2, w3, b3)
            return feats[:B, :feature_dim], sem[:B, :sem_dim]

        cp = _compiler_params(tb, (E, Z, feat_pad),
                              (w1e, w1n, b1, w2, b2), itemsize)
        feats = pl.pallas_call(
            _mlp_kernel,
            grid=grid,
            out_shape=jax.ShapeDtypeStruct((bp, feat_pad), out_dtype),
            in_specs=[row_spec(E), row_spec(Z),
                      resident_spec(w1e.shape), resident_spec(w1n.shape),
                      resident_spec(b1.shape), resident_spec(w2.shape),
                      resident_spec(b2.shape)],
            out_specs=row_spec(feat_pad),
            compiler_params=cp,
        )(embd, noise, w1e, w1n, b1, w2, b2)
        return feats[:B, :feature_dim]

    # hidden_size falsy: single Linear (optionally fused with semantic head)
    we, wn, b = params["we"], params["wn"], params["b"]
    feat_pad = we.shape[1]
    if semantic_reconstruction:
        w3, b3 = params["w3"], params["b3"]
        sem_pad = w3.shape[1]
        cp = _compiler_params(tb, (E, Z, feat_pad, sem_pad),
                              (we, wn, b, w3, b3), itemsize)
        feats, sem = pl.pallas_call(
            _lin_semrec_kernel,
            grid=grid,
            out_shape=(jax.ShapeDtypeStruct((bp, feat_pad), out_dtype),
                       jax.ShapeDtypeStruct((bp, sem_pad), out_dtype)),
            in_specs=[row_spec(E), row_spec(Z),
                      resident_spec(we.shape), resident_spec(wn.shape),
                      resident_spec(b.shape), resident_spec(w3.shape),
                      resident_spec(b3.shape)],
            out_specs=(row_spec(feat_pad), row_spec(sem_pad)),
            compiler_params=cp,
        )(embd, noise, we, wn, b, w3, b3)
        return feats[:B, :feature_dim], sem[:B, :sem_dim]

    cp = _compiler_params(tb, (E, Z, feat_pad), (we, wn, b), itemsize)
    feats = pl.pallas_call(
        _lin_kernel,
        grid=grid,
        out_shape=jax.ShapeDtypeStruct((bp, feat_pad), out_dtype),
        in_specs=[row_spec(E), row_spec(Z),
                  resident_spec(we.shape), resident_spec(wn.shape),
                  resident_spec(b.shape)],
        out_specs=row_spec(feat_pad),
        compiler_params=cp,
    )(embd, noise, we, wn, b)
    return feats[:B, :feature_dim]


# ---------------------------- reference (JAX) --------------------------------


def gmmn_reference(params, embd, noise, *, hidden_size, feature_dim,
                   semantic_reconstruction=False):
    """Pure-JAX reference on the logical (unpadded) weights, f32 math."""
    E = embd.shape[1]
    Z = noise.shape[1]
    S = E + Z
    x = jnp.concatenate((embd, noise), axis=1).astype(jnp.float32)
    if hidden_size:
        w1 = jnp.concatenate((params["w1e"][:, :hidden_size],
                              params["w1n"][:, :hidden_size]), axis=0).astype(jnp.float32)
        b1 = params["b1"][:, :hidden_size].astype(jnp.float32)
        h = x @ w1 + b1
        h = jnp.where(h > 0, h, 0.2 * h)
        w2 = params["w2"][:hidden_size, :feature_dim].astype(jnp.float32)
        b2 = params["b2"][:, :feature_dim].astype(jnp.float32)
        feat = h @ w2 + b2
    else:
        w = jnp.concatenate((params["we"][:, :feature_dim],
                             params["wn"][:, :feature_dim]), axis=0).astype(jnp.float32)
        b = params["b"][:, :feature_dim].astype(jnp.float32)
        feat = x @ w + b
    if semantic_reconstruction:
        w3 = params["w3"][:feature_dim, :S].astype(jnp.float32)
        b3 = params["b3"][:, :S].astype(jnp.float32)
        sem = feat @ w3 + b3
        return feat, sem
    return feat


# ------------------------------ main -----------------------------------------


if __name__ == "__main__":
    key = jax.random.PRNGKey(0)
    kp1, kp2, kp3, ke, kn = jax.random.split(key, 5)

    # small, module-consistent shapes (batch not divisible by the tile on purpose)
    batch = 40
    noise_dim = 16
    embed_dim = 16
    hidden_size = 32
    feature_dim = 64
    block_b = 16          # demo-sized batch tile; use >=256 in production

    embd = jax.random.normal(ke, (batch, embed_dim), jnp.float32)
    noise = jax.random.normal(kn, (batch, noise_dim), jnp.float32)

    # ---- case 1: hidden MLP, no semantic reconstruction ----------------------
    params = init_gmmn_params(kp1, noise_dim, embed_dim, hidden_size, feature_dim)
    feats = gmmn_forward(params, embd, noise, hidden_size=hidden_size,
                         feature_dim=feature_dim, block_b=block_b)
    feats = jax.block_until_ready(feats)
    ref = gmmn_reference(params, embd, noise, hidden_size=hidden_size,
                         feature_dim=feature_dim)
    assert feats.shape == (batch, feature_dim)
    assert jnp.allclose(feats, ref, atol=1e-4, rtol=1e-4)

    # ---- case 2: hidden MLP + fused semantic reconstruction ------------------
    params_sr = init_gmmn_params(kp2, noise_dim, embed_dim, hidden_size, feature_dim,
                                 semantic_reconstruction=True)
    feats2, sem2 = gmmn_forward(params_sr, embd, noise, hidden_size=hidden_size,
                                feature_dim=feature_dim, semantic_reconstruction=True,
                                block_b=block_b)
    feats2 = jax.block_until_ready(feats2)
    sem2 = jax.block_until_ready(sem2)
    ref_f, ref_s = gmmn_reference(params_sr, embd, noise, hidden_size=hidden_size,
                                  feature_dim=feature_dim, semantic_reconstruction=True)
    assert feats2.shape == (batch, feature_dim)
    assert sem2.shape == (batch, noise_dim + embed_dim)
    assert jnp.allclose(feats2, ref_f, atol=1e-4, rtol=1e-4)
    assert jnp.allclose(sem2, ref_s, atol=1e-4, rtol=1e-4)

    # ---- case 3: no hidden layer + fused semantic reconstruction -------------
    params_lin = init_gmmn_params(kp3, noise_dim, embed_dim, 0, feature_dim,
                                  semantic_reconstruction=True)
    feats3, sem3 = gmmn_forward(params_lin, embd, noise, hidden_size=0,
                                feature_dim=feature_dim, semantic_reconstruction=True,
                                block_b=block_b)
    feats3 = jax.block_until_ready(feats3)
    sem3 = jax.block_until_ready(sem3)
    ref_f3, ref_s3 = gmmn_reference(params_lin, embd, noise, hidden_size=0,
                                    feature_dim=feature_dim, semantic_reconstruction=True)
    assert jnp.allclose(feats3, ref_f3, atol=1e-4, rtol=1e-4)
    assert jnp.allclose(sem3, ref_s3, atol=1e-4, rtol=1e-4)

    # ---- case 4: bf16 weights/activations (MXU-native), f32 accumulation -----
    params_bf = init_gmmn_params(kp1, noise_dim, embed_dim, hidden_size, feature_dim,
                                 dtype=jnp.bfloat16)
    feats_bf = gmmn_forward(params_bf, embd.astype(jnp.bfloat16),
                            noise.astype(jnp.bfloat16), hidden_size=hidden_size,
                            feature_dim=feature_dim, block_b=block_b)
    feats_bf = jax.block_until_ready(feats_bf)
    ref_bf = gmmn_reference(params_bf, embd, noise, hidden_size=hidden_size,
                            feature_dim=feature_dim)
    assert feats_bf.shape == (batch, feature_dim)
    assert jnp.allclose(feats_bf.astype(jnp.float32), ref_bf, atol=1e-1, rtol=1e-1)

    print("KERNEL_OK")
</pallas_src>

<mosaic_0001>
module attributes {stable_mosaic.version = 11 : i64} {
  func.func @_mlp_kernel(%arg0: i32, %arg1: memref<16x16xf32, #tpu.memory_space<vmem>>, %arg2: memref<16x16xf32, #tpu.memory_space<vmem>>, %arg3: memref<16x128xf32, #tpu.memory_space<vmem>>, %arg4: memref<16x128xf32, #tpu.memory_space<vmem>>, %arg5: memref<1x128xf32, #tpu.memory_space<vmem>>, %arg6: memref<128x128xf32, #tpu.memory_space<vmem>>, %arg7: memref<1x128xf32, #tpu.memory_space<vmem>>, %arg8: memref<16x128xf32, #tpu.memory_space<vmem>>) attributes {dimension_semantics = [#tpu.dimension_semantics<parallel>], iteration_bounds = array<i64: 3>, scalar_prefetch = 0 : i64, scratch_operands = 0 : i64, tpu.core_type = #tpu.core_type<tc>, window_params = [{transform_indices = @transform_0, window_bounds = array<i64: 16, 16>}, {transform_indices = @transform_1, window_bounds = array<i64: 16, 16>}, {pipeline_mode = #tpu.pipeline_mode<synchronous>, transform_indices = @transform_2, window_bounds = array<i64: 16, 128>}, {pipeline_mode = #tpu.pipeline_mode<synchronous>, transform_indices = @transform_3, window_bounds = array<i64: 16, 128>}, {pipeline_mode = #tpu.pipeline_mode<synchronous>, transform_indices = @transform_4, window_bounds = array<i64: 1, 128>}, {pipeline_mode = #tpu.pipeline_mode<synchronous>, transform_indices = @transform_5, window_bounds = array<i64: 128, 128>}, {pipeline_mode = #tpu.pipeline_mode<synchronous>, transform_indices = @transform_6, window_bounds = array<i64: 1, 128>}, {transform_indices = @transform_7, window_bounds = array<i64: 16, 128>}]} {
    %c0 = arith.constant 0 : index
    %c0_0 = arith.constant 0 : index
    %0 = vector.load %arg1[%c0, %c0_0] : memref<16x16xf32, #tpu.memory_space<vmem>>, vector<16x16xf32>
    %c0_1 = arith.constant 0 : index
    %c0_2 = arith.constant 0 : index
    %1 = vector.load %arg3[%c0_1, %c0_2] : memref<16x128xf32, #tpu.memory_space<vmem>>, vector<16x128xf32>
    %cst = arith.constant dense<0.000000e+00> : vector<16x128xf32>
    %2 = tpu.matmul %0, %1, %cst {dimension_numbers = #tpu.dot_dimension_numbers<[1], [0], [0], [1], [0, 0, 1, 1], [], []>} : vector<16x16xf32>, vector<16x128xf32>, vector<16x128xf32> -> vector<16x128xf32>
    %c0_3 = arith.constant 0 : index
    %c0_4 = arith.constant 0 : index
    %3 = vector.load %arg2[%c0_3, %c0_4] : memref<16x16xf32, #tpu.memory_space<vmem>>, vector<16x16xf32>
    %c0_5 = arith.constant 0 : index
    %c0_6 = arith.constant 0 : index
    %4 = vector.load %arg4[%c0_5, %c0_6] : memref<16x128xf32, #tpu.memory_space<vmem>>, vector<16x128xf32>
    %cst_7 = arith.constant dense<0.000000e+00> : vector<16x128xf32>
    %5 = tpu.matmul %3, %4, %cst_7 {dimension_numbers = #tpu.dot_dimension_numbers<[1], [0], [0], [1], [0, 0, 1, 1], [], []>} : vector<16x16xf32>, vector<16x128xf32>, vector<16x128xf32> -> vector<16x128xf32>
    %6 = arith.addf %2, %5 : vector<16x128xf32>
    %c0_8 = arith.constant 0 : index
    %c0_9 = arith.constant 0 : index
    %7 = vector.load %arg5[%c0_8, %c0_9] : memref<1x128xf32, #tpu.memory_space<vmem>>, vector<1x128xf32>
    %8 = vector.broadcast %7 : vector<1x128xf32> to vector<16x128xf32>
    %9 = arith.addf %6, %8 : vector<16x128xf32>
    %cst_10 = arith.constant 0.000000e+00 : f32
    %10 = vector.broadcast %cst_10 : f32 to vector<16x128xf32>
    %11 = arith.cmpf ogt, %9, %10 : vector<16x128xf32>
    %cst_11 = arith.constant 2.000000e-01 : f32
    %12 = vector.broadcast %cst_11 : f32 to vector<16x128xf32>
    %13 = arith.mulf %12, %9 : vector<16x128xf32>
    %14 = arith.select %11, %9, %13 : vector<16x128xi1>, vector<16x128xf32>
    %c0_12 = arith.constant 0 : index
    %c0_13 = arith.constant 0 : index
    %15 = vector.load %arg6[%c0_12, %c0_13] : memref<128x128xf32, #tpu.memory_space<vmem>>, vector<128x128xf32>
    %cst_14 = arith.constant dense<0.000000e+00> : vector<16x128xf32>
    %16 = tpu.matmul %14, %15, %cst_14 {dimension_numbers = #tpu.dot_dimension_numbers<[1], [0], [0], [1], [0, 0, 1, 1], [], []>} : vector<16x128xf32>, vector<128x128xf32>, vector<16x128xf32> -> vector<16x128xf32>
    %c0_15 = arith.constant 0 : index
    %c0_16 = arith.constant 0 : index
    %17 = vector.load %arg7[%c0_15, %c0_16] : memref<1x128xf32, #tpu.memory_space<vmem>>, vector<1x128xf32>
    %18 = vector.broadcast %17 : vector<1x128xf32> to vector<16x128xf32>
    %19 = arith.addf %16, %18 : vector<16x128xf32>
    %c0_17 = arith.constant 0 : index
    %c0_18 = arith.constant 0 : index
    %20 = vector.load %arg8[%c0_17, %c0_18] : memref<16x128xf32, #tpu.memory_space<vmem>>, vector<16x128xf32>
    tpu.vector_store %arg8[%c0_17, %c0_18], %19 {strides = array<i32>} : memref<16x128xf32, #tpu.memory_space<vmem>>, vector<16x128xf32>,
    return
  }
  func.func @transform_0(%arg0: i32) -> (i32, i32) {
    %c0_i32 = arith.constant 0 : i32
    %c0_i32_0 = arith.constant 0 : i32
    return %arg0, %c0_i32 : i32, i32
  }
  func.func @transform_1(%arg0: i32) -> (i32, i32) {
    %c0_i32 = arith.constant 0 : i32
    %c0_i32_0 = arith.constant 0 : i32
    return %arg0, %c0_i32 : i32, i32
  }
  func.func @transform_2(%arg0: i32) -> (i32, i32) {
    %c0_i32 = arith.constant 0 : i32
    %c0_i32_0 = arith.constant 0 : i32
    %c0_i32_1 = arith.constant 0 : i32
    return %c0_i32, %c0_i32_0 : i32, i32
  }
  func.func @transform_3(%arg0: i32) -> (i32, i32) {
    %c0_i32 = arith.constant 0 : i32
    %c0_i32_0 = arith.constant 0 : i32
    %c0_i32_1 = arith.constant 0 : i32
    return %c0_i32, %c0_i32_0 : i32, i32
  }
  func.func @transform_4(%arg0: i32) -> (i32, i32) {
    %c0_i32 = arith.constant 0 : i32
    %c0_i32_0 = arith.constant 0 : i32
    %c0_i32_1 = arith.constant 0 : i32
    return %c0_i32, %c0_i32_0 : i32, i32
  }
  func.func @transform_5(%arg0: i32) -> (i32, i32) {
    %c0_i32 = arith.constant 0 : i32
    %c0_i32_0 = arith.constant 0 : i32
    %c0_i32_1 = arith.constant 0 : i32
    return %c0_i32, %c0_i32_0 : i32, i32
  }
  func.func @transform_6(%arg0: i32) -> (i32, i32) {
    %c0_i32 = arith.constant 0 : i32
    %c0_i32_0 = arith.constant 0 : i32
    %c0_i32_1 = arith.constant 0 : i32
    return %c0_i32, %c0_i32_0 : i32, i32
  }
  func.func @transform_7(%arg0: i32) -> (i32, i32) {
    %c0_i32 = arith.constant 0 : i32
    %c0_i32_0 = arith.constant 0 : i32
    return %arg0, %c0_i32 : i32, i32
  }
}

</mosaic_0001>

<llo_original>
// kernel: gmmn_forward.1
$region0: #{gmmn_forward.1}
  #allocation0 [shape = 'u32[]', space=smem, size = 0x4, offset = 0x4, fixed_abs, tag = 'smem constant byte address 0x4 - core index']
  #allocation1 [shape = 'u32[144,128]{1,0:T(1,128)}', space=vmem, size = 0x12000, scoped, tag = 'internal scratch']
  %s0 = inlined_call_operand.vmem [shape: f32[48,16], index: 0, kind: input, shape index: {}]
  %s1 = inlined_call_operand.vmem [shape: f32[48,16], index: 1, kind: input, shape index: {}]
  %s2 = inlined_call_operand.vmem [shape: f32[16,128], index: 2, kind: input, shape index: {}]
  %s3 = inlined_call_operand.vmem [shape: f32[16,128], index: 3, kind: input, shape index: {}]
  %s4 = inlined_call_operand.vmem [shape: f32[1,128], index: 4, kind: input, shape index: {}]
  %s5 = inlined_call_operand.vmem [shape: f32[128,128], index: 5, kind: input, shape index: {}]
  %s6 = inlined_call_operand.vmem [shape: f32[1,128], index: 6, kind: input, shape index: {}]
  %s7 = inlined_call_operand.vmem [shape: f32[48,128], index: 7, kind: output, shape index: {}]
  %s8 = sld [smem:[#allocation0]]
  $region61: #{gmmn_forward.1} parent=0
    _
  %s10 = ssub.s32 1, %s8
  %s11 = scalar_select 0, %s10, %s8
  loop: start=0, step=1, limit=5
  $region2: #{gmmn_forward.1} parent=0 // loop_pre_header
    _
  $region3: #{gmmn_forward.1} parent=0 // loop_header
    %s13 = sphi 0, %s17
    %p14 = scmp.ge.s32.totalorder %s13, 5
    %s23 = sphi 0, %s25
    %s26 = sphi 0, %s23
    %s27 = sphi 0, %s26
    %s43 = sphi 0, %s27
    %s49 = sphi 0, %s51
    %s52 = sphi 0, %s49
    %s53 = sphi 0, %s52
    %s69 = sphi 0, %s53
    %s73 = sphi 0, %s73
    %s75 = sphi 0, %s73
    %s76 = sphi 0, %s75
    %s90 = sphi 0, %s76
    %s94 = sphi 0, %s94
    %s96 = sphi 0, %s94
    %s97 = sphi 0, %s96
    %s111 = sphi 0, %s97
    %s115 = sphi 0, %s115
    %s117 = sphi 0, %s115
    %s118 = sphi 0, %s117
    %s132 = sphi 0, %s118
    %s136 = sphi 0, %s136
    %s138 = sphi 0, %s136
    %s139 = sphi 0, %s138
    %s153 = sphi 0, %s139
    %s157 = sphi 0, %s157
    %s159 = sphi 0, %s157
    %s160 = sphi 0, %s159
    %s174 = sphi 0, %s160
    %s180 = sphi 0, %s182
    %s183 = sphi 0, %s180
    %s184 = sphi 0, %s183
    %s200 = sphi 0, %s184
  $region4: #{gmmn_forward.1} parent=0 // loop_header_branch
    %16 = sbr.rel (%p14) target = $region8
  $region5: #{gmmn_forward.1} parent=0 // loop_body
    %s18 = ssub.s32 %s13, 1
    %s19 = ssub.s32 %s13, 2
    %s20 = sadd.s32 %s13, 1
    %s21 = ssub.s32 %s13, %s20
    %p22 = scmp.eq.s32.totalorder %s21, 0
    %s24 = sadd.s32 %s23, 1
    %s25 = scalar_select %p22, %s23, %s24
    %p28 = pneg %p22
    %p29 = scmp.eq.s32.totalorder %s13, 2
    %p30 = por %p28, %p29
    %p31 = scmp.ne.s32.totalorder %s23, %s26
    %p32 = scmp.eq.s32.totalorder %s13, 0
    %p33 = por %p31, %p32
    %p34 = scmp.ne.s32.totalorder %s23, %s26
    %p35 = scmp.eq.s32.totalorder %s18, 2
    %p36 = por %p34, %p35
    %p37 = scmp.ne.s32.totalorder %s26, %s27
    %p38 = scmp.eq.s32.totalorder %s18, 0
    %p39 = por %p37, %p38
    %p40 = scmp.ne.s32.totalorder %s26, %s27
    %p41 = scmp.eq.s32.totalorder %s19, 2
    %p42 = por %p40, %p41
    %p44 = scmp.ne.s32.totalorder %s27, %s43
    %p45 = scmp.eq.s32.totalorder %s19, 0
    %p46 = por %p44, %p45
    %s47 = ssub.s32 %s13, %s20
    %p48 = scmp.eq.s32.totalorder %s47, 0
    %s50 = sadd.s32 %s49, 1
    %s51 = scalar_select %p48, %s49, %s50
    %p54 = pneg %p48
    %p55 = scmp.eq.s32.totalorder %s13, 2
    %p56 = por %p54, %p55
    %p57 = scmp.ne.s32.totalorder %s49, %s52
    %p58 = scmp.eq.s32.totalorder %s13, 0
    %p59 = por %p57, %p58
    %p60 = scmp.ne.s32.totalorder %s49, %s52
    %p61 = scmp.eq.s32.totalorder %s18, 2
    %p62 = por %p60, %p61
    %p63 = scmp.ne.s32.totalorder %s52, %s53
    %p64 = scmp.eq.s32.totalorder %s18, 0
    %p65 = por %p63, %p64
    %p66 = scmp.ne.s32.totalorder %s52, %s53
    %p67 = scmp.eq.s32.totalorder %s19, 2
    %p68 = por %p66, %p67
    %p70 = scmp.ne.s32.totalorder %s53, %s69
    %p71 = scmp.eq.s32.totalorder %s19, 0
    %p72 = por %p70, %p71
    %s74 = sadd.s32 %s73, 1
    %p77 = scmp.eq.s32.totalorder %s13, 2
    %p78 = scmp.ne.s32.totalorder %s73, %s75
    %p79 = scmp.eq.s32.totalorder %s13, 0
    %p80 = por %p78, %p79
    %p81 = scmp.ne.s32.totalorder %s73, %s75
    %p82 = scmp.eq.s32.totalorder %s18, 2
    %p83 = por %p81, %p82
    %p84 = scmp.ne.s32.totalorder %s75, %s76
    %p85 = scmp.eq.s32.totalorder %s18, 0
    %p86 = por %p84, %p85
    %p87 = scmp.ne.s32.totalorder %s75, %s76
    %p88 = scmp.eq.s32.totalorder %s19, 2
    %p89 = por %p87, %p88
    %p91 = scmp.ne.s32.totalorder %s76, %s90
    %p92 = scmp.eq.s32.totalorder %s19, 0
    %p93 = por %p91, %p92
    %s95 = sadd.s32 %s94, 1
    %p98 = scmp.eq.s32.totalorder %s13, 2
    %p99 = scmp.ne.s32.totalorder %s94, %s96
    %p100 = scmp.eq.s32.totalorder %s13, 0
    %p101 = por %p99, %p100
    %p102 = scmp.ne.s32.totalorder %s94, %s96
    %p103 = scmp.eq.s32.totalorder %s18, 2
    %p104 = por %p102, %p103
    %p105 = scmp.ne.s32.totalorder %s96, %s97
    %p106 = scmp.eq.s32.totalorder %s18, 0
    %p107 = por %p105, %p106
    %p108 = scmp.ne.s32.totalorder %s96, %s97
    %p109 = scmp.eq.s32.totalorder %s19, 2
    %p110 = por %p108, %p109
    %p112 = scmp.ne.s32.totalorder %s97, %s111
    %p113 = scmp.eq.s32.totalorder %s19, 0
    %p114 = por %p112, %p113
    %s116 = sadd.s32 %s115, 1
    %p119 = scmp.eq.s32.totalorder %s13, 2
    %p120 = scmp.ne.s32.totalorder %s115, %s117
    %p121 = scmp.eq.s32.totalorder %s13, 0
    %p122 = por %p120, %p121
    %p123 = scmp.ne.s32.totalorder %s115, %s117
    %p124 = scmp.eq.s32.totalorder %s18, 2
    %p125 = por %p123, %p124
    %p126 = scmp.ne.s32.totalorder %s117, %s118
    %p127 = scmp.eq.s32.totalorder %s18, 0
    %p128 = por %p126, %p127
    %p129 = scmp.ne.s32.totalorder %s117, %s118
    %p130 = scmp.eq.s32.totalorder %s19, 2
    %p131 = por %p129, %p130
    %p133 = scmp.ne.s32.totalorder %s118, %s132
    %p134 = scmp.eq.s32.totalorder %s19, 0
    %p135 = por %p133, %p134
    %s137 = sadd.s32 %s136, 1
    %p140 = scmp.eq.s32.totalorder %s13, 2
    %p141 = scmp.ne.s32.totalorder %s136, %s138
    %p142 = scmp.eq.s32.totalorder %s13, 0
    %p143 = por %p141, %p142
    %p144 = scmp.ne.s32.totalorder %s136, %s138
    %p145 = scmp.eq.s32.totalorder %s18, 2
    %p146 = por %p144, %p145
    %p147 = scmp.ne.s32.totalorder %s138, %s139
    %p148 = scmp.eq.s32.totalorder %s18, 0
    %p149 = por %p147, %p148
    %p150 = scmp.ne.s32.totalorder %s138, %s139
    %p151 = scmp.eq.s32.totalorder %s19, 2
    %p152 = por %p150, %p151
    %p154 = scmp.ne.s32.totalorder %s139, %s153
    %p155 = scmp.eq.s32.totalorder %s19, 0
    %p156 = por %p154, %p155
    %s158 = sadd.s32 %s157, 1
    %p161 = scmp.eq.s32.totalorder %s13, 2
    %p162 = scmp.ne.s32.totalorder %s157, %s159
    %p163 = scmp.eq.s32.totalorder %s13, 0
    %p164 = por %p162, %p163
    %p165 = scmp.ne.s32.totalorder %s157, %s159
    %p166 = scmp.eq.s32.totalorder %s18, 2
    %p167 = por %p165, %p166
    %p168 = scmp.ne.s32.totalorder %s159, %s160
    %p169 = scmp.eq.s32.totalorder %s18, 0
    %p170 = por %p168, %p169
    %p171 = scmp.ne.s32.totalorder %s159, %s160
    %p172 = scmp.eq.s32.totalorder %s19, 2
    %p173 = por %p171, %p172
    %p175 = scmp.ne.s32.totalorder %s160, %s174
    %p176 = scmp.eq.s32.totalorder %s19, 0
    %p177 = por %p175, %p176
    %s178 = ssub.s32 %s13, %s20
    %p179 = scmp.eq.s32.totalorder %s178, 0
    %s181 = sadd.s32 %s180, 1
    %s182 = scalar_select %p179, %s180, %s181
    %p185 = pneg %p179
    %p186 = scmp.eq.s32.totalorder %s13, 2
    %p187 = por %p185, %p186
    %p188 = scmp.ne.s32.totalorder %s180, %s183
    %p189 = scmp.eq.s32.totalorder %s13, 0
    %p190 = por %p188, %p189
    %p191 = scmp.ne.s32.totalorder %s180, %s183
    %p192 = scmp.eq.s32.totalorder %s18, 2
    %p193 = por %p191, %p192
    %p194 = scmp.ne.s32.totalorder %s183, %s184
    %p195 = scmp.eq.s32.totalorder %s18, 0
    %p196 = por %p194, %p195
    %p197 = scmp.ne.s32.totalorder %s183, %s184
    %p198 = scmp.eq.s32.totalorder %s19, 2
    %p199 = por %p197, %p198
    %p201 = scmp.ne.s32.totalorder %s184, %s200
    %p202 = scmp.eq.s32.totalorder %s19, 0
    %p203 = por %p201, %p202
    %p204 = scmp.le.s32.totalorder 1, %s13
    %p205 = scmp.lt.s32.totalorder %s13, 4
    %p206 = pnand %p204, %p205
    %p207 = pneg %p206
    // Predicated region
    $region9: #{gmmn_forward.1} parent=5 // pred_check
      _
    $region10: #{gmmn_forward.1} parent=5 // pred_check_branch
      %209 = sbr.rel (%p206) target = $region12
    $region11: #{gmmn_forward.1} parent=5 // pred_region
      %s210 = ssub.s32 %s13, 1
      // Predicated region
      $region13: #{gmmn_forward.1} parent=11 // pred_check
        %p211 = pneg %p86
      $region14: #{gmmn_forward.1} parent=11 // pred_check_branch
        %213 = sbr.rel (%p211) target = $region16
      $region15: #{gmmn_forward.1} parent=11 // pred_region
        _
      $region16: #{gmmn_forward.1} parent=11 // pred_fallthru
        _
      // Predicated region
      $region17: #{gmmn_forward.1} parent=11 // pred_check
        %p214 = pneg %p107
      $region18: #{gmmn_forward.1} parent=11 // pred_check_branch
        %216 = sbr.rel (%p214) target = $region20
      $region19: #{gmmn_forward.1} parent=11 // pred_region
        _
      $region20: #{gmmn_forward.1} parent=11 // pred_fallthru
        _
      // Predicated region
      $region21: #{gmmn_forward.1} parent=11 // pred_check
        %p217 = pneg %p128
      $region22: #{gmmn_forward.1} parent=11 // pred_check_branch
        %219 = sbr.rel (%p217) target = $region24
      $region23: #{gmmn_forward.1} parent=11 // pred_region
        _
      $region24: #{gmmn_forward.1} parent=11 // pred_fallthru
        _
      // Predicated region
      $region25: #{gmmn_forward.1} parent=11 // pred_check
        %p220 = pneg %p149
      $region26: #{gmmn_forward.1} parent=11 // pred_check_branch
        %222 = sbr.rel (%p220) target = $region28
      $region27: #{gmmn_forward.1} parent=11 // pred_region
        _
      $region28: #{gmmn_forward.1} parent=11 // pred_fallthru
        _
      // Predicated region
      $region29: #{gmmn_forward.1} parent=11 // pred_check
        %p223 = pneg %p170
      $region30: #{gmmn_forward.1} parent=11 // pred_check_branch
        %225 = sbr.rel (%p223) target = $region32
      $region31: #{gmmn_forward.1} parent=11 // pred_region
        _
      $region32: #{gmmn_forward.1} parent=11 // pred_fallthru
        _
    $region12: #{gmmn_forward.1} parent=5 // pred_fallthru
      _
    %p226 = scmp.lt.s32.totalorder %s13, 3
    // Predicated region
    $region33: #{gmmn_forward.1} parent=5 // pred_check
      %p227 = pneg %p226
    $region34: #{gmmn_forward.1} parent=5 // pred_check_branch
      %229 = sbr.rel (%p227) target = $region36
    $region35: #{gmmn_forward.1} parent=5 // pred_region
      // Predicated region
      $region37: #{gmmn_forward.1} parent=35 // pred_check
        %p230 = pneg %p33
      $region38: #{gmmn_forward.1} parent=35 // pred_check_branch
        %232 = sbr.rel (%p230) target = $region40
      $region39: #{gmmn_forward.1} parent=35 // pred_region
        %s233 = smul.u32 2, %s13
        %p234 = scmp.lt.s32.totalorder %s233, 5
        %s235 = scalar_select %p234, %s233, 5
        %s236 = smul.addr %s235, 8
        %s237 = scalar_lea.vmem %s0, %s236
        %s238 = smul.u32 2, %s13
      $region40: #{gmmn_forward.1} parent=35 // pred_fallthru
        _
      // Predicated region
      $region41: #{gmmn_forward.1} parent=35 // pred_check
        %p239 = pneg %p59
      $region42: #{gmmn_forward.1} parent=35 // pred_check_branch
        %241 = sbr.rel (%p239) target = $region44
      $region43: #{gmmn_forward.1} parent=35 // pred_region
        %s242 = smul.u32 2, %s13
        %p243 = scmp.lt.s32.totalorder %s242, 5
        %s244 = scalar_select %p243, %s242, 5
        %s245 = smul.addr %s244, 8
        %s246 = scalar_lea.vmem %s1, %s245
        %s247 = smul.u32 2, %s13
      $region44: #{gmmn_forward.1} parent=35 // pred_fallthru
        _
    $region36: #{gmmn_forward.1} parent=5 // pred_fallthru
      _
    %p248 = scmp.le.s32.totalorder 1, %s13
    %p249 = scmp.lt.s32.totalorder %s13, 4
    %p250 = pnand %p248, %p249
    %p251 = pneg %p250
    // Predicated region
    $region45: #{gmmn_forward.1} parent=5 // pred_check
      _
    $region46: #{gmmn_forward.1} parent=5 // pred_check_branch
      %253 = sbr.rel (%p250) target = $region48
    $region47: #{gmmn_forward.1} parent=5 // pred_region
      %s254 = ssub.s32 %s13, 1
      %s255 = smul.u32 2, %s18
      %p256 = scmp.lt.s32.totalorder %s255, 5
      %s257 = scalar_select %p256, %s255, 5
      %s258 = smul.addr %s257, 8
      %s259 = scalar_lea.vmem %s0, %s258
      %p260 = pneg %p39
      %p261 = pneg %p36
      %s262 = smul.u32 2, %s18
      %p263 = scmp.lt.s32.totalorder %s262, 5
      %s264 = scalar_select %p263, %s262, 5
      %s265 = smul.addr %s264, 8
      %s266 = scalar_lea.vmem %s1, %s265
      %p267 = pneg %p65
      %p268 = pneg %p62
      %p269 = pneg %p86
      %p270 = pneg %p83
      %p271 = pneg %p107
      %p272 = pneg %p104
      %p273 = pneg %p128
      %p274 = pneg %p125
      %p275 = pneg %p149
      %p276 = pneg %p146
      %p277 = pneg %p170
      %p278 = pneg %p167
      %p279 = pneg %p196
      %p280 = pneg %p193
      %s281 = smul.u32 2, %s18
      %p282 = scmp.lt.s32.totalorder %s281, 5
      %s283 = scalar_select %p282, %s281, 5
      %s284 = smul.addr %s283, 8
      %s285 = scalar_lea.vmem %s7, %s284
      %s286 = smul.u32 2, %s18
      %p287 = scmp.lt.s32.totalorder %s286, 5
      %s288 = scalar_select %p287, %s286, 5
      %s289 = smul.addr %s288, 8
      %s290 = scalar_lea.vmem %s0, %s289
      %s291 = smul.u32 2, %s18
      %s292 = smul.u32 2, %s18
      %p293 = scmp.lt.s32.totalorder %s292, 5
      %s294 = scalar_select %p293, %s292, 5
      %s295 = smul.addr %s294, 8
      %s296 = scalar_lea.vmem %s1, %s295
      %s297 = smul.u32 2, %s18
      %s298 = smul.u32 2, %s18
      %p299 = scmp.lt.s32.totalorder %s298, 5
      %s300 = scalar_select %p299, %s298, 5
      %s301 = smul.addr %s300, 8
      %s302 = scalar_lea.vmem %s7, %s301
      %s303 = smul.u32 2, %s18
      %v304 = vld [vmem:[%s290] sm:$0xff]
      %v305 = vld [vmem:[%s290 + $0x8] sm:$0xff]
      %v306 = vld [vmem:[%s2] sm:$0xff]
      %v307 = vld [vmem:[%s2 + $0x8] sm:$0xff]
      %v308 = vld [vmem:[%s296] sm:$0xff]
      %v309 = vld [vmem:[%s296 + $0x8] sm:$0xff]
      %v310 = vld [vmem:[%s3] sm:$0xff]
      %v311 = vld [vmem:[%s3 + $0x8] sm:$0xff]
      %vm312 = vcmask 130048
      %v314 = vsel %vm312, %v308, 0
      %v317 = vsel %vm312, %v309, 0
      %319 = vmatprep.subr.mxu0 0.0
      %320 = vmatpush1.msra.mxu0 %v310
      %321 = vmatprep.subr.mxu0 0.0
      %322 = vmatpush1.msra.mxu0 %v311
      %323 = vmatprep.subr.mxu0 0.0
      %324 = vmatpush1.msra.mxu0 0.0
      %325 = vmatprep.subr.mxu0 0.0
      %326 = vmatpush1.msra.mxu0 0.0
      %327 = vmatprep.subr.mxu0 0.0
      %328 = vmatpush1.msra.mxu0 0.0
      %329 = vmatprep.subr.mxu0 0.0
      %330 = vmatpush1.msra.mxu0 0.0
      %331 = vmatprep.subr.mxu0 0.0
      %332 = vmatpush1.msra.mxu0 0.0
      %333 = vmatprep.subr.mxu0 0.0
      %334 = vmatpush1.msra.mxu0 0.0
      %335 = vmatprep.subr.mxu0 0.0
      %336 = vmatpush1.msra.mxu0 0.0
      %337 = vmatprep.subr.mxu0 0.0
      %338 = vmatpush1.msra.mxu0 0.0
      %339 = vmatprep.subr.mxu0 0.0
      %340 = vmatpush1.msra.mxu0 0.0
      %341 = vmatprep.subr.mxu0 0.0
      %342 = vmatpush1.msra.mxu0 0.0
      %343 = vmatprep.subr.mxu0 0.0
      %344 = vmatpush1.msra.mxu0 0.0
      %345 = vmatprep.subr.mxu0 0.0
      %346 = vmatpush1.msra.mxu0 0.0
      %347 = vmatprep.subr.mxu0 0.0
      %348 = vmatpush1.msra.mxu0 0.0
      %349 = vmatprep.subr.mxu0 0.0
      %350 = vmatpush1.msra.mxu0 0.0
      %351 = vmatprep.subr.mxu0 0.0
      %352 = vmatpush1.msra.mxu0 0.0
      %353 = vmatprep.subr.mxu0 0.0
      %354 = vmatpush1.msra.mxu0 0.0
      %355 = vmatprep.subr.mxu0 0.0
      %356 = vmatpush1.msra.mxu0 0.0
      %357 = vmatprep.subr.mxu0 0.0
      %358 = vmatpush1.msra.mxu0 0.0
      %359 = vmatprep.subr.mxu0 0.0
      %360 = vmatpush1.msra.mxu0 0.0
      %361 = vmatprep.subr.mxu0 0.0
      %362 = vmatpush1.msra.mxu0 0.0
      %363 = vmatprep.subr.mxu0 0.0
      %364 = vmatpush1.msra.mxu0 0.0
      %365 = vmatprep.subr.mxu0 0.0
      %366 = vmatpush1.msra.mxu0 0.0
      %367 = vmatprep.subr.mxu0 0.0
      %368 = vmatpush1.msra.mxu0 0.0
      %369 = vmatprep.subr.mxu0 0.0
      %370 = vmatpush1.msra.mxu0 0.0
      %371 = vmatprep.subr.mxu0 0.0
      %372 = vmatpush1.msra.mxu0 0.0
      %373 = vmatprep.subr.mxu0 0.0
      %374 = vmatpush1.msra.mxu0 0.0
      %375 = vmatprep.subr.mxu0 0.0
      %376 = vmatpush1.msra.mxu0 0.0
      %377 = vmatprep.subr.mxu0 0.0
      %378 = vmatpush1.msra.mxu0 0.0
      %379 = vmatprep.subr.mxu0 0.0
      %380 = vmatpush1.msra.mxu0 0.0
      %381 = vmatprep.subr.mxu0 0.0
      %382 = vmatpush1.msra.mxu0 0.0
      %383 = vmatprep.mubr.f32.mxu0 0.0
      %384 = vmatmul.mubr.f32.gmra.mrb[0].mxu0 %v314
      %v385 = vpop.f32.mrb[0].mxu0
      %v386 = vadd.f32 0.0, %v385
      %v387 = vpop.f32.mrb[0].mxu0
      %388 = vmatprep.mubr.f32.mxu0 0.0
      %389 = vmatmul.mubr.f32.gmra.mrb[0].mxu0 %v317
      %v390 = vpop.f32.mrb[0].mxu0
      %v391 = vadd.f32 0.0, %v390
      %v392 = vpop.f32.mrb[0].mxu0
      %393 = vdwg.mxu0
      %v395 = vsel %vm312, %v304, 0
      %v398 = vsel %vm312, %v305, 0
      %400 = vmatprep.subr.mxu0 0.0
      %401 = vmatpush1.msra.mxu0 %v306
      %402 = vmatprep.subr.mxu0 0.0
      %403 = vmatpush1.msra.mxu0 %v307
      %404 = vmatprep.subr.mxu0 0.0
      %405 = vmatpush1.msra.mxu0 0.0
      %406 = vmatprep.subr.mxu0 0.0
      %407 = vmatpush1.msra.mxu0 0.0
      %408 = vmatprep.subr.mxu0 0.0
      %409 = vmatpush1.msra.mxu0 0.0
      %410 = vmatprep.subr.mxu0 0.0
      %411 = vmatpush1.msra.mxu0 0.0
      %412 = vmatprep.subr.mxu0 0.0
      %413 = vmatpush1.msra.mxu0 0.0
      %414 = vmatprep.subr.mxu0 0.0
      %415 = vmatpush1.msra.mxu0 0.0
      %416 = vmatprep.subr.mxu0 0.0
      %417 = vmatpush1.msra.mxu0 0.0
      %418 = vmatprep.subr.mxu0 0.0
      %419 = vmatpush1.msra.mxu0 0.0
      %420 = vmatprep.subr.mxu0 0.0
      %421 = vmatpush1.msra.mxu0 0.0
      %422 = vmatprep.subr.mxu0 0.0
      %423 = vmatpush1.msra.mxu0 0.0
      %424 = vmatprep.subr.mxu0 0.0
      %425 = vmatpush1.msra.mxu0 0.0
      %426 = vmatprep.subr.mxu0 0.0
      %427 = vmatpush1.msra.mxu0 0.0
      %428 = vmatprep.subr.mxu0 0.0
      %429 = vmatpush1.msra.mxu0 0.0
      %430 = vmatprep.subr.mxu0 0.0
      %431 = vmatpush1.msra.mxu0 0.0
      %432 = vmatprep.subr.mxu0 0.0
      %433 = vmatpush1.msra.mxu0 0.0
      %434 = vmatprep.subr.mxu0 0.0
      %435 = vmatpush1.msra.mxu0 0.0
      %436 = vmatprep.subr.mxu0 0.0
      %437 = vmatpush1.msra.mxu0 0.0
      %438 = vmatprep.subr.mxu0 0.0
      %439 = vmatpush1.msra.mxu0 0.0
      %440 = vmatprep.subr.mxu0 0.0
      %441 = vmatpush1.msra.mxu0 0.0
      %442 = vmatprep.subr.mxu0 0.0
      %443 = vmatpush1.msra.mxu0 0.0
      %444 = vmatprep.subr.mxu0 0.0
      %445 = vmatpush1.msra.mxu0 0.0
      %446 = vmatprep.subr.mxu0 0.0
      %447 = vmatpush1.msra.mxu0 0.0
      %448 = vmatprep.subr.mxu0 0.0
      %449 = vmatpush1.msra.mxu0 0.0
      %450 = vmatprep.subr.mxu0 0.0
      %451 = vmatpush1.msra.mxu0 0.0
      %452 = vmatprep.subr.mxu0 0.0
      %453 = vmatpush1.msra.mxu0 0.0
      %454 = vmatprep.subr.mxu0 0.0
      %455 = vmatpush1.msra.mxu0 0.0
      %456 = vmatprep.subr.mxu0 0.0
      %457 = vmatpush1.msra.mxu0 0.0
      %458 = vmatprep.subr.mxu0 0.0
      %459 = vmatpush1.msra.mxu0 0.0
      %460 = vmatprep.subr.mxu0 0.0
      %461 = vmatpush1.msra.mxu0 0.0
      %462 = vmatprep.subr.mxu0 0.0
      %463 = vmatpush1.msra.mxu0 0.0
      %464 = vmatprep.mubr.f32.mxu0 0.0
      %465 = vmatmul.mubr.f32.gmra.mrb[0].mxu0 %v395
      %v466 = vpop.f32.mrb[0].mxu0
      %v467 = vadd.f32 %v386, %v466
      %v468 = vpop.f32.mrb[0].mxu0
      %469 = vmatprep.mubr.f32.mxu0 0.0
      %470 = vmatmul.mubr.f32.gmra.mrb[0].mxu0 %v398
      %v471 = vpop.f32.mrb[0].mxu0
      %v472 = vadd.f32 %v391, %v471
      %v473 = vpop.f32.mrb[0].mxu0
      %474 = vdwg.mxu0
      %v475 = vld [vmem:[%s4] sm:$0x1]
      %v477 = vlaneseq
      %v478 = vshrl.u32 %v477, 7
      %v479 = vsub.s32 0, %v478
      %v480 = vrot.slane %v475, %v479
      %v482 = vadd.f32 %v467, %v480
      %v483 = vadd.f32 %v472, %v480
      %vm484 = vcmp.gt.f32.partialorder %v482, 0.0
      %vm485 = vcmp.gt.f32.partialorder %v483, 0.0
      %v486 = vmul.f32 %v482, 0.2
      %v487 = vmul.f32 %v483, 0.2
      %v488 = vsel %vm484, %v482, %v486
      %v489 = vsel %vm485, %v483, %v487
      %v490 = vld [vmem:[%s5] sm:$0xff]
      %v491 = vld [vmem:[%s5 + $0x8] sm:$0xff]
      %v492 = vld [vmem:[%s5 + $0x10] sm:$0xff]
      %v493 = vld [vmem:[%s5 + $0x18] sm:$0xff]
      %v494 = vld [vmem:[%s5 + $0x20] sm:$0xff]
      %v495 = vld [vmem:[%s5 + $0x28] sm:$0xff]
      %v496 = vld [vmem:[%s5 + $0x30] sm:$0xff]
      %v497 = vld [vmem:[%s5 + $0x38] sm:$0xff]
      %v498 = vld [vmem:[%s5 + $0x40] sm:$0xff]
      %v499 = vld [vmem:[%s5 + $0x48] sm:$0xff]
      %v500 = vld [vmem:[%s5 + $0x50] sm:$0xff]
      %v501 = vld [vmem:[%s5 + $0x58] sm:$0xff]
      %v502 = vld [vmem:[%s5 + $0x60] sm:$0xff]
      %v503 = vld [vmem:[%s5 + $0x68] sm:$0xff]
      %v504 = vld [vmem:[%s5 + $0x70] sm:$0xff]
      %v505 = vld [vmem:[%s5 + $0x78] sm:$0xff]
      %v506 = vld [vmem:[%s6] sm:$0x1]
      %v508 = vlaneseq
      %v509 = vshrl.u32 %v508, 7
      %v510 = vsub.s32 0, %v509
      %v511 = vrot.slane %v506, %v510
      %513 = vmatprep.subr.mxu0 0.0
      %514 = vmatpush1.msra.mxu0 %v490
      %515 = vmatprep.subr.mxu0 0.0
      %516 = vmatpush1.msra.mxu0 %v491
      %517 = vmatprep.subr.mxu0 0.0
      %518 = vmatpush1.msra.mxu0 %v492
      %519 = vmatprep.subr.mxu0 0.0
      %520 = vmatpush1.msra.mxu0 %v493
      %521 = vmatprep.subr.mxu0 0.0
      %522 = vmatpush1.msra.mxu0 %v494
      %523 = vmatprep.subr.mxu0 0.0
      %524 = vmatpush1.msra.mxu0 %v495
      %525 = vmatprep.subr.mxu0 0.0
      %526 = vmatpush1.msra.mxu0 %v496
      %527 = vmatprep.subr.mxu0 0.0
      %528 = vmatpush1.msra.mxu0 %v497
      %529 = vmatprep.subr.mxu0 0.0
      %530 = vmatpush1.msra.mxu0 %v498
      %531 = vmatprep.subr.mxu0 0.0
      %532 = vmatpush1.msra.mxu0 %v499
      %533 = vmatprep.subr.mxu0 0.0
      %534 = vmatpush1.msra.mxu0 %v500
      %535 = vmatprep.subr.mxu0 0.0
      %536 = vmatpush1.msra.mxu0 %v501
      %537 = vmatprep.subr.mxu0 0.0
      %538 = vmatpush1.msra.mxu0 %v502
      %539 = vmatprep.subr.mxu0 0.0
      %540 = vmatpush1.msra.mxu0 %v503
      %541 = vmatprep.subr.mxu0 0.0
      %542 = vmatpush1.msra.mxu0 %v504
      %543 = vmatprep.subr.mxu0 0.0
      %544 = vmatpush1.msra.mxu0 %v505
      %545 = vmatprep.subr.mxu0 0.0
      %546 = vmatpush1.msra.mxu0 0.0
      %547 = vmatprep.subr.mxu0 0.0
      %548 = vmatpush1.msra.mxu0 0.0
      %549 = vmatprep.subr.mxu0 0.0
      %550 = vmatpush1.msra.mxu0 0.0
      %551 = vmatprep.subr.mxu0 0.0
      %552 = vmatpush1.msra.mxu0 0.0
      %553 = vmatprep.subr.mxu0 0.0
      %554 = vmatpush1.msra.mxu0 0.0
      %555 = vmatprep.subr.mxu0 0.0
      %556 = vmatpush1.msra.mxu0 0.0
      %557 = vmatprep.subr.mxu0 0.0
      %558 = vmatpush1.msra.mxu0 0.0
      %559 = vmatprep.subr.mxu0 0.0
      %560 = vmatpush1.msra.mxu0 0.0
      %561 = vmatprep.subr.mxu0 0.0
      %562 = vmatpush1.msra.mxu0 0.0
      %563 = vmatprep.subr.mxu0 0.0
      %564 = vmatpush1.msra.mxu0 0.0
      %565 = vmatprep.subr.mxu0 0.0
      %566 = vmatpush1.msra.mxu0 0.0
      %567 = vmatprep.subr.mxu0 0.0
      %568 = vmatpush1.msra.mxu0 0.0
      %569 = vmatprep.subr.mxu0 0.0
      %570 = vmatpush1.msra.mxu0 0.0
      %571 = vmatprep.subr.mxu0 0.0
      %572 = vmatpush1.msra.mxu0 0.0
      %573 = vmatprep.subr.mxu0 0.0
      %574 = vmatpush1.msra.mxu0 0.0
      %575 = vmatprep.subr.mxu0 0.0
      %576 = vmatpush1.msra.mxu0 0.0
      %577 = vmatprep.mubr.f32.mxu0 0.0
      %578 = vmatmul.mubr.f32.gmra.mrb[0].mxu0 %v488
      %v579 = vpop.f32.mrb[0].mxu0
      %v580 = vadd.f32 %v511, %v579
      %v581 = vpop.f32.mrb[0].mxu0
      %582 = vmatprep.mubr.f32.mxu0 0.0
      %583 = vmatmul.mubr.f32.gmra.mrb[0].mxu0 %v489
      %v584 = vpop.f32.mrb[0].mxu0
      %v585 = vadd.f32 %v511, %v584
      %v586 = vpop.f32.mrb[0].mxu0
      %587 = vdwg.mxu0
      %588 = vst [vmem:[%s302] sm:$0xff] %v580
      %589 = vst [vmem:[%s302 + $0x8] sm:$0xff] %v585
      %s590 = smul.u32 2, %s18
      %p591 = scmp.lt.s32.totalorder %s590, 5
      %s592 = scalar_select %p591, %s590, 5
      %s593 = smul.addr %s592, 8
      %s594 = scalar_lea.vmem %s7, %s593
      // Predicated region
      $region49: #{gmmn_forward.1} parent=47 // pred_check
        %p595 = pneg %p193
      $region50: #{gmmn_forward.1} parent=47 // pred_check_branch
        %597 = sbr.rel (%p595) target = $region52
      $region51: #{gmmn_forward.1} parent=47 // pred_region
        %s598 = smul.u32 2, %s18
      $region52: #{gmmn_forward.1} parent=47 // pred_fallthru
        _
    $region48: #{gmmn_forward.1} parent=5 // pred_fallthru
      _
    %p599 = scmp.le.s32.totalorder 2, %s13
    // Predicated region
    $region53: #{gmmn_forward.1} parent=5 // pred_check
      %p600 = pneg %p599
    $region54: #{gmmn_forward.1} parent=5 // pred_check_branch
      %602 = sbr.rel (%p600) target = $region56
    $region55: #{gmmn_forward.1} parent=5 // pred_region
      %s603 = ssub.s32 %s13, 2
      // Predicated region
      $region57: #{gmmn_forward.1} parent=55 // pred_check
        %p604 = pneg %p199
      $region58: #{gmmn_forward.1} parent=55 // pred_check_branch
        %606 = sbr.rel (%p604) target = $region60
      $region59: #{gmmn_forward.1} parent=55 // pred_region
        %s607 = smul.u32 2, %s19
        %p608 = scmp.lt.s32.totalorder %s607, 5
        %s609 = scalar_select %p608, %s607, 5
        %s610 = smul.addr %s609, 8
        %s611 = scalar_lea.vmem %s7, %s610
      $region60: #{gmmn_forward.1} parent=55 // pred_fallthru
        _
    $region56: #{gmmn_forward.1} parent=5 // pred_fallthru
      _
  $region6: #{gmmn_forward.1} parent=0 // loop_footer
    %s17 = sadd.s32 1, %s13
  $region7: #{gmmn_forward.1} parent=0 // loop_footer_branch
    %12 = sbr.rel target = $region3
  $region8: #{gmmn_forward.1} parent=0 // loop_exit
    _

</llo_original>
